<compile_context>
chip_gen: v5e
topology: v5e:2x2
jax: 0.10.0
libtpu: 0.0.40
codegen_flags: <defaults>
</compile_context>

<pallas_src>
import math
import functools

import jax
import jax.numpy as jnp
from jax import lax
from jax.experimental import pallas as pl
from jax.experimental.pallas import tpu as pltpu

_MiB = 1024 * 1024


def _round_up(x, m):
    return ((x + m - 1) // m) * m


def _device_vmem_bytes():
    """Physical VMEM of the attached TPU; conservative (v7x-sized) fallback."""
    try:
        info = pltpu.get_tpu_info()
        for attr in ("vmem_capacity_bytes", "vmem_size_bytes", "vmem_bytes"):
            v = getattr(info, attr, None)
            if v:
                return int(v)
    except Exception:
        pass
    return 64 * _MiB


def _vmem_footprint(tn, tv, H, wsz, out_sz):
    """Estimated VMEM bytes with the buffer counts used below."""
    return (2 * tn * H * wsz           # x tile (bf16), double-buffered
            + 1 * H * H * wsz          # dense weight, single-buffered (grid-constant)
            + 3 * tv * H * wsz         # embedding rows, triple-buffered
            + 2 * tn * tv * out_sz     # logits tile, double-buffered
            + tn * H * wsz             # transform scratch
            + 3 * tv * 4 + 8 * H * 4)  # decoder-bias tiles + dense/LN params


def _pick_tiles(N, V, H, budget, tn_req, tv_req, wsz, out_sz):
    """Choose (tn, tv) that fit the per-device VMEM budget."""
    big_vmem = budget >= 96 * _MiB
    tn = tn_req if tn_req is not None else (2048 if big_vmem else 1024)
    tv = tv_req if tv_req is not None else 2048

    # >= 2 roughly-equal token tiles keeps both v7x TensorCores busy.
    if N >= 2048:
        tn = min(tn, _round_up((N + 1) // 2, 16))

    # Clamp to the problem and align to the (16, 128) bf16 tile granule; a tile
    # that spans the whole (possibly ragged) dim is exempt from the granule rule.
    tn = N if tn >= N else max(16, (min(tn, N) // 16) * 16)
    tv = V if tv >= V else max(128, (min(tv, V) // 128) * 128)

    # Shrink until the double/triple-buffered footprint fits the VMEM budget
    # (rarely triggers with the defaults above).
    while _vmem_footprint(tn, tv, H, wsz, out_sz) > budget:
        if tv >= tn and tv > 512:
            tv = max(512, ((tv // 2) // 128) * 128)
        elif tn > 256:
            tn = max(256, ((tn // 2) // 16) * 16)
        elif tv > 128:
            tv = max(128, ((tv // 2) // 128) * 128)
        else:
            break
    return tn, tv


def _lm_head_kernel(x_ref, dw_ref, db_ref, lw_ref, lb_ref, ew_ref, bias_ref,
                    o_ref, h_scr, *, eps):
    """One (token-tile i, vocab-tile j) grid step."""
    # ---- transform (dense + erf-gelu + LayerNorm): once per token tile ----
    @pl.when(pl.program_id(1) == 0)
    def _():
        # torch Linear weight is (out, in): contract the last dims of both
        # operands (A @ B^T) -> MXU-native, no in-kernel transpose.
        h = lax.dot_general(x_ref[...], dw_ref[...],
                            dimension_numbers=(((1,), (1,)), ((), ())),
                            preferred_element_type=jnp.float32)
        h = h + db_ref[...]
        # erf-formulation gelu (matches the torch.erf version)
        h = h * 0.5 * (1.0 + lax.erf(h * jnp.float32(1.0 / math.sqrt(2.0))))
        # BertLayerNorm (TF style: eps inside the sqrt).  Out-of-bounds rows of
        # a ragged token tile go through this too; they only produce garbage in
        # output rows that are masked on store.
        u = jnp.mean(h, axis=-1, keepdims=True)
        s = jnp.mean((h - u) ** 2, axis=-1, keepdims=True)
        h = (h - u) * lax.rsqrt(s + eps)
        h = lw_ref[...] * h + lb_ref[...]
        h_scr[...] = h.astype(h_scr.dtype)

    # ---- decoder: (tn, H) x (tv, H) contracted on H -> (tn, tv) logits ----
    logits = lax.dot_general(h_scr[...], ew_ref[...],
                             dimension_numbers=(((1,), (1,)), ((), ())),
                             preferred_element_type=jnp.float32)
    o_ref[...] = (logits + bias_ref[...]).astype(o_ref.dtype)


def _build_specs(tn, tv, H, with_buffering):
    """BlockSpecs; optionally with per-operand pipeline buffering."""
    def spec(shape, index_map, buffers=None):
        if with_buffering and buffers is not None:
            return pl.BlockSpec(shape, index_map,
                                pipeline_mode=pl.Buffered(buffers))
        return pl.BlockSpec(shape, index_map)

    in_specs = [
        spec((tn, H), lambda i, j: (i, 0)),              # x tile (bf16)
        spec((H, H), lambda i, j: (0, 0), buffers=1),    # dense weight (grid-constant)
        spec((1, H), lambda i, j: (0, 0), buffers=1),    # dense bias
        spec((1, H), lambda i, j: (0, 0), buffers=1),    # LN gamma
        spec((1, H), lambda i, j: (0, 0), buffers=1),    # LN beta
        spec((tv, H), lambda i, j: (j, 0), buffers=3),   # embedding rows (streamed)
        spec((1, tv), lambda i, j: (0, j)),              # decoder bias tile
    ]
    out_spec = pl.BlockSpec((tn, tv), lambda i, j: (i, j))
    return in_specs, out_spec


def bert_lm_prediction_head(hidden_states, params, *, tn=None, tv=None,
                            eps=1e-12, weight_dtype=jnp.bfloat16,
                            out_dtype=jnp.float32):
    """hidden_states: (B, S, H). Returns (B, S, V) logits in out_dtype."""
    B, S, H = hidden_states.shape
    V = params["decoder_weight"].shape[0]
    N = B * S

    wsz = jnp.dtype(weight_dtype).itemsize
    out_sz = jnp.dtype(out_dtype).itemsize

    # Per-generation VMEM budget (leave headroom for compiler-internal scratch).
    dev_vmem = _device_vmem_bytes()
    budget = max(min(dev_vmem - 8 * _MiB, 100 * _MiB), 24 * _MiB)
    tn, tv = _pick_tiles(N, V, H, budget, tn, tv, wsz, out_sz)
    grid = (pl.cdiv(N, tn), pl.cdiv(V, tv))

    foot = _vmem_footprint(tn, tv, H, wsz, out_sz)
    vmem_limit = int(min(max(foot * 5 // 4 + 2 * _MiB, 32 * _MiB),
                         dev_vmem - 4 * _MiB))

    # bf16 activations / weights, f32 MXU accumulation inside the kernel.
    x2d = hidden_states.reshape(N, H).astype(weight_dtype)
    dense_w = params["dense_weight"].astype(weight_dtype)             # (H, H) torch (out, in)
    dense_b = params["dense_bias"].reshape(1, H).astype(jnp.float32)
    ln_w = params["ln_weight"].reshape(1, H).astype(jnp.float32)
    ln_b = params["ln_bias"].reshape(1, H).astype(jnp.float32)
    dec_w = params["decoder_weight"].astype(weight_dtype)             # (V, H) tied embedding
    dec_b = params["decoder_bias"].reshape(1, V).astype(jnp.float32)

    cost = pl.CostEstimate(
        flops=2 * N * H * H + 2 * N * H * V,
        transcendentals=N * H,                            # erf inside the gelu
        bytes_accessed=(N * H * wsz + H * H * wsz
                        + grid[0] * V * H * wsz           # embedding re-streamed per token tile
                        + N * V * out_sz + (V + 4 * H) * 4))

    def run(with_buffering):
        in_specs, out_spec = _build_specs(tn, tv, H, with_buffering)
        return pl.pallas_call(
            functools.partial(_lm_head_kernel, eps=eps),
            out_shape=jax.ShapeDtypeStruct((N, V), out_dtype),
            grid_spec=pltpu.PrefetchScalarGridSpec(
                num_scalar_prefetch=0,
                grid=grid,
                in_specs=in_specs,
                out_specs=out_spec,
                scratch_shapes=[pltpu.VMEM((tn, H), weight_dtype)]),
            compiler_params=pltpu.CompilerParams(
                dimension_semantics=("parallel", "arbitrary"),
                vmem_limit_bytes=vmem_limit),
            cost_estimate=cost,
        )(x2d, dense_w, dense_b, ln_w, ln_b, dec_w, dec_b)

    try:
        out2d = run(with_buffering=True)
    except Exception:
        # Per-BlockSpec pipeline_mode unavailable/rejected on this jax build:
        # fall back to default double-buffering (identical numerics, more VMEM).
        out2d = run(with_buffering=False)

    return out2d.reshape(B, S, V)


def _reference(hidden_states, params, eps=1e-12, weight_dtype=jnp.bfloat16):
    """Pure-JAX reference mirroring the kernel's bf16 streaming of x / W / h."""
    x = hidden_states.astype(weight_dtype).astype(jnp.float32)
    dw = params["dense_weight"].astype(weight_dtype).astype(jnp.float32)
    h = jnp.einsum("bsh,oh->bso", x, dw,
                   precision=lax.Precision.HIGHEST) + params["dense_bias"]
    h = h * 0.5 * (1.0 + lax.erf(h / jnp.float32(math.sqrt(2.0))))
    u = jnp.mean(h, axis=-1, keepdims=True)
    s = jnp.mean((h - u) ** 2, axis=-1, keepdims=True)
    h = (h - u) / jnp.sqrt(s + eps)
    h = params["ln_weight"] * h + params["ln_bias"]
    h = h.astype(weight_dtype).astype(jnp.float32)
    ew = params["decoder_weight"].astype(weight_dtype).astype(jnp.float32)
    return jnp.einsum("bsh,vh->bsv", h, ew,
                      precision=lax.Precision.HIGHEST) + params["decoder_bias"]


if __name__ == "__main__":
    # Small synthetic config.  vocab=300 (not a multiple of 128) and seq=9
    # (N=18, not a multiple of 16) exercise the masked ragged-edge blocks that
    # replace the old padded-output + slice-copy path.
    B, S, H, V = 2, 9, 32, 300

    key = jax.random.PRNGKey(0)
    k_x, k_dw, k_db, k_lnw, k_lnb, k_emb, k_bias = jax.random.split(key, 7)

    hidden_states = jax.random.normal(k_x, (B, S, H), dtype=jnp.float32)

    params = {
        "dense_weight": jax.random.normal(k_dw, (H, H), dtype=jnp.float32) * 0.05,
        "dense_bias": jax.random.normal(k_db, (H,), dtype=jnp.float32) * 0.02,
        "ln_weight": 1.0 + 0.1 * jax.random.normal(k_lnw, (H,), dtype=jnp.float32),
        "ln_bias": 0.05 * jax.random.normal(k_lnb, (H,), dtype=jnp.float32),
        # tied bert_model_embedding_weights: (vocab, hidden)
        "decoder_weight": jax.random.normal(k_emb, (V, H), dtype=jnp.float32) * 0.05,
        "decoder_bias": 0.02 * jax.random.normal(k_bias, (V,), dtype=jnp.float32),
    }

    ref = _reference(hidden_states, params)

    # 1) auto-selected (device-sized) tiles
    out = jax.block_until_ready(bert_lm_prediction_head(hidden_states, params))
    assert out.shape == (B, S, V)
    assert jnp.allclose(out, ref, atol=1e-2, rtol=1e-2), "mismatch (auto tiles)"

    # 2) explicit small tiles: multi-step pipeline + ragged token & vocab edges
    out_small = jax.block_until_ready(
        bert_lm_prediction_head(hidden_states, params, tn=16, tv=128))
    assert out_small.shape == (B, S, V)
    assert jnp.allclose(out_small, ref, atol=1e-2, rtol=1e-2), "mismatch (small tiles)"

    print("KERNEL_OK")
</pallas_src>

<mosaic_0001>
module attributes {stable_mosaic.version = 11 : i64} {
  func.func @_lm_head_kernel(%arg0: i32, %arg1: i32, %arg2: memref<18x32xbf16, #tpu.memory_space<vmem>>, %arg3: memref<32x32xbf16, #tpu.memory_space<vmem>>, %arg4: memref<1x32xf32, #tpu.memory_space<vmem>>, %arg5: memref<1x32xf32, #tpu.memory_space<vmem>>, %arg6: memref<1x32xf32, #tpu.memory_space<vmem>>, %arg7: memref<300x32xbf16, #tpu.memory_space<vmem>>, %arg8: memref<1x300xf32, #tpu.memory_space<vmem>>, %arg9: memref<18x300xf32, #tpu.memory_space<vmem>>, %arg10: memref<18x32xbf16, #tpu.memory_space<vmem>>) attributes {dimension_semantics = [#tpu.dimension_semantics<parallel>, #tpu.dimension_semantics<arbitrary>], iteration_bounds = array<i64: 1, 1>, scalar_prefetch = 0 : i64, scratch_operands = 1 : i64, tpu.core_type = #tpu.core_type<tc>, window_params = [{transform_indices = @transform_0, window_bounds = array<i64: 18, 32>}, {pipeline_mode = #tpu.pipeline_mode<synchronous>, transform_indices = @transform_1, window_bounds = array<i64: 32, 32>}, {pipeline_mode = #tpu.pipeline_mode<synchronous>, transform_indices = @transform_2, window_bounds = array<i64: 1, 32>}, {pipeline_mode = #tpu.pipeline_mode<synchronous>, transform_indices = @transform_3, window_bounds = array<i64: 1, 32>}, {pipeline_mode = #tpu.pipeline_mode<synchronous>, transform_indices = @transform_4, window_bounds = array<i64: 1, 32>}, {transform_indices = @transform_5, window_bounds = array<i64: 300, 32>}, {transform_indices = @transform_6, window_bounds = array<i64: 1, 300>}, {transform_indices = @transform_7, window_bounds = array<i64: 18, 300>}]} {
    %c0_i32 = arith.constant 0 : i32
    %0 = arith.cmpi eq, %arg1, %c0_i32 : i32
    %1 = arith.extui %0 : i1 to i32
    %c0_i32_0 = arith.constant 0 : i32
    %2 = arith.cmpi ne, %1, %c0_i32_0 : i32
    scf.if %2 {
      %c0_8 = arith.constant 0 : index
      %c0_9 = arith.constant 0 : index
      %10 = vector.load %arg2[%c0_8, %c0_9] : memref<18x32xbf16, #tpu.memory_space<vmem>>, vector<18x32xbf16>
      %c0_10 = arith.constant 0 : index
      %c0_11 = arith.constant 0 : index
      %11 = vector.load %arg3[%c0_10, %c0_11] : memref<32x32xbf16, #tpu.memory_space<vmem>>, vector<32x32xbf16>
      %cst_12 = arith.constant dense<0.000000e+00> : vector<18x32xf32>
      %12 = tpu.matmul %10, %11, %cst_12 {dimension_numbers = #tpu.dot_dimension_numbers<[1], [1], [0], [0], [0, 0, 1, 0], [], []>} : vector<18x32xbf16>, vector<32x32xbf16>, vector<18x32xf32> -> vector<18x32xf32>
      %c0_13 = arith.constant 0 : index
      %c0_14 = arith.constant 0 : index
      %13 = vector.load %arg4[%c0_13, %c0_14] : memref<1x32xf32, #tpu.memory_space<vmem>>, vector<1x32xf32>
      %14 = vector.broadcast %13 : vector<1x32xf32> to vector<18x32xf32>
      %15 = arith.addf %12, %14 : vector<18x32xf32>
      %cst_15 = arith.constant 5.000000e-01 : f32
      %16 = vector.broadcast %cst_15 : f32 to vector<18x32xf32>
      %17 = arith.mulf %15, %16 : vector<18x32xf32>
      %cst_16 = arith.constant 0.707106769 : f32
      %18 = vector.broadcast %cst_16 : f32 to vector<18x32xf32>
      %19 = arith.mulf %15, %18 : vector<18x32xf32>
      %20 = math.erf %19 : vector<18x32xf32>
      %cst_17 = arith.constant 1.000000e+00 : f32
      %21 = vector.broadcast %cst_17 : f32 to vector<18x32xf32>
      %22 = arith.addf %21, %20 : vector<18x32xf32>
      %23 = arith.mulf %17, %22 : vector<18x32xf32>
      %cst_18 = arith.constant dense<0.000000e+00> : vector<18xf32>
      %24 = vector.multi_reduction <add>, %23, %cst_18 [1] : vector<18x32xf32> to vector<18xf32>
      %25 = vector.shape_cast %24 : vector<18xf32> to vector<18x1xf32>
      %cst_19 = arith.constant 3.200000e+01 : f32
      %26 = vector.broadcast %cst_19 : f32 to vector<18x1xf32>
      %27 = arith.divf %25, %26 : vector<18x1xf32>
      %28 = vector.broadcast %27 : vector<18x1xf32> to vector<18x32xf32>
      %29 = arith.subf %23, %28 : vector<18x32xf32>
      %30 = arith.mulf %29, %29 : vector<18x32xf32>
      %cst_20 = arith.constant dense<0.000000e+00> : vector<18xf32>
      %31 = vector.multi_reduction <add>, %30, %cst_20 [1] : vector<18x32xf32> to vector<18xf32>
      %32 = vector.shape_cast %31 : vector<18xf32> to vector<18x1xf32>
      %cst_21 = arith.constant 3.200000e+01 : f32
      %33 = vector.broadcast %cst_21 : f32 to vector<18x1xf32>
      %34 = arith.divf %32, %33 : vector<18x1xf32>
      %35 = vector.broadcast %27 : vector<18x1xf32> to vector<18x32xf32>
      %36 = arith.subf %23, %35 : vector<18x32xf32>
      %cst_22 = arith.constant 9.99999996E-13 : f32
      %37 = vector.broadcast %cst_22 : f32 to vector<18x1xf32>
      %38 = arith.addf %34, %37 : vector<18x1xf32>
      %39 = math.rsqrt %38 : vector<18x1xf32>
      %40 = vector.broadcast %39 : vector<18x1xf32> to vector<18x32xf32>
      %41 = arith.mulf %36, %40 : vector<18x32xf32>
      %c0_23 = arith.constant 0 : index
      %c0_24 = arith.constant 0 : index
      %42 = vector.load %arg5[%c0_23, %c0_24] : memref<1x32xf32, #tpu.memory_space<vmem>>, vector<1x32xf32>
      %43 = vector.broadcast %42 : vector<1x32xf32> to vector<18x32xf32>
      %44 = arith.mulf %43, %41 : vector<18x32xf32>
      %c0_25 = arith.constant 0 : index
      %c0_26 = arith.constant 0 : index
      %45 = vector.load %arg6[%c0_25, %c0_26] : memref<1x32xf32, #tpu.memory_space<vmem>>, vector<1x32xf32>
      %46 = vector.broadcast %45 : vector<1x32xf32> to vector<18x32xf32>
      %47 = arith.addf %44, %46 : vector<18x32xf32>
      %48 = arith.truncf %47 : vector<18x32xf32> to vector<18x32xbf16>
      %c0_27 = arith.constant 0 : index
      %c0_28 = arith.constant 0 : index
      %49 = vector.load %arg10[%c0_27, %c0_28] : memref<18x32xbf16, #tpu.memory_space<vmem>>, vector<18x32xbf16>
      tpu.vector_store %arg10[%c0_27, %c0_28], %48 {strides = array<i32>} : memref<18x32xbf16, #tpu.memory_space<vmem>>, vector<18x32xbf16>,
    } else {
    }
    %c0 = arith.constant 0 : index
    %c0_1 = arith.constant 0 : index
    %3 = vector.load %arg10[%c0, %c0_1] : memref<18x32xbf16, #tpu.memory_space<vmem>>, vector<18x32xbf16>
    %c0_2 = arith.constant 0 : index
    %c0_3 = arith.constant 0 : index
    %4 = vector.load %arg7[%c0_2, %c0_3] : memref<300x32xbf16, #tpu.memory_space<vmem>>, vector<300x32xbf16>
    %cst = arith.constant dense<0.000000e+00> : vector<18x300xf32>
    %5 = tpu.matmul %3, %4, %cst {dimension_numbers = #tpu.dot_dimension_numbers<[1], [1], [0], [0], [0, 0, 1, 0], [], []>} : vector<18x32xbf16>, vector<300x32xbf16>, vector<18x300xf32> -> vector<18x300xf32>
    %c0_4 = arith.constant 0 : index
    %c0_5 = arith.constant 0 : index
    %6 = vector.load %arg8[%c0_4, %c0_5] : memref<1x300xf32, #tpu.memory_space<vmem>>, vector<1x300xf32>
    %7 = vector.broadcast %6 : vector<1x300xf32> to vector<18x300xf32>
    %8 = arith.addf %5, %7 : vector<18x300xf32>
    %c0_6 = arith.constant 0 : index
    %c0_7 = arith.constant 0 : index
    %9 = vector.load %arg9[%c0_6, %c0_7] : memref<18x300xf32, #tpu.memory_space<vmem>>, vector<18x300xf32>
    tpu.vector_store %arg9[%c0_6, %c0_7], %8 {strides = array<i32>} : memref<18x300xf32, #tpu.memory_space<vmem>>, vector<18x300xf32>,
    return
  }
  func.func @transform_0(%arg0: i32, %arg1: i32) -> (i32, i32) {
    %c0_i32 = arith.constant 0 : i32
    %c0_i32_0 = arith.constant 0 : i32
    return %arg0, %c0_i32 : i32, i32
  }
  func.func @transform_1(%arg0: i32, %arg1: i32) -> (i32, i32) {
    %c0_i32 = arith.constant 0 : i32
    %c0_i32_0 = arith.constant 0 : i32
    %c0_i32_1 = arith.constant 0 : i32
    return %c0_i32, %c0_i32_0 : i32, i32
  }
  func.func @transform_2(%arg0: i32, %arg1: i32) -> (i32, i32) {
    %c0_i32 = arith.constant 0 : i32
    %c0_i32_0 = arith.constant 0 : i32
    %c0_i32_1 = arith.constant 0 : i32
    return %c0_i32, %c0_i32_0 : i32, i32
  }
  func.func @transform_3(%arg0: i32, %arg1: i32) -> (i32, i32) {
    %c0_i32 = arith.constant 0 : i32
    %c0_i32_0 = arith.constant 0 : i32
    %c0_i32_1 = arith.constant 0 : i32
    return %c0_i32, %c0_i32_0 : i32, i32
  }
  func.func @transform_4(%arg0: i32, %arg1: i32) -> (i32, i32) {
    %c0_i32 = arith.constant 0 : i32
    %c0_i32_0 = arith.constant 0 : i32
    %c0_i32_1 = arith.constant 0 : i32
    return %c0_i32, %c0_i32_0 : i32, i32
  }
  func.func @transform_5(%arg0: i32, %arg1: i32) -> (i32, i32) {
    %c0_i32 = arith.constant 0 : i32
    %c0_i32_0 = arith.constant 0 : i32
    return %arg1, %c0_i32 : i32, i32
  }
  func.func @transform_6(%arg0: i32, %arg1: i32) -> (i32, i32) {
    %c0_i32 = arith.constant 0 : i32
    %c0_i32_0 = arith.constant 0 : i32
    return %c0_i32, %arg1 : i32, i32
  }
  func.func @transform_7(%arg0: i32, %arg1: i32) -> (i32, i32) {
    %c0_i32 = arith.constant 0 : i32
    return %arg0, %arg1 : i32, i32
  }
}

</mosaic_0001>

<llo_original>
// kernel: tpu_custom_call.1
$region0: #{tpu_custom_call.1}
  #allocation0 [shape = 'u32[]', space=smem, size = 0x4, offset = 0x4, fixed_abs, tag = 'smem constant byte address 0x4 - core index']
  #allocation1 [shape = 'u32[72,128]{1,0:T(1,128)}', space=vmem, size = 0x9000, scoped, tag = 'internal scratch']
  #allocation2 [shape = 'bf16[18,32]{1,0:T(8,128)(2,1)}', space=vmem, size = 0x1800, scoped, tag = 'scratch operand']
  %s0 = inlined_call_operand.vmem [shape: bf16[18,32], index: 0, kind: input, shape index: {}]
  %s1 = inlined_call_operand.vmem [shape: bf16[32,32], index: 1, kind: input, shape index: {}]
  %s2 = inlined_call_operand.vmem [shape: f32[1,32], index: 2, kind: input, shape index: {}]
  %s3 = inlined_call_operand.vmem [shape: f32[1,32], index: 3, kind: input, shape index: {}]
  %s4 = inlined_call_operand.vmem [shape: f32[1,32], index: 4, kind: input, shape index: {}]
  %s5 = inlined_call_operand.vmem [shape: bf16[300,32], index: 5, kind: input, shape index: {}]
  %s6 = inlined_call_operand.vmem [shape: f32[1,300], index: 6, kind: input, shape index: {}]
  %s7 = inlined_call_operand.hbm [shape: f32[18,300], index: 7, kind: output, shape index: {}]
  %s8 = sld [smem:[#allocation0]]
  $region42: #{tpu_custom_call.1} parent=0
    _
  %s10 = ssub.s32 1, %s8
  %s11 = scalar_select 0, %s10, %s8
  $region1: #{tpu_custom_call.1} parent=0
    #allocation3 [shape = 'u8[36864]{0}', space=vmem, size = 0x9000, scoped, tag = 'output window, operand 0, single buffered']
    #allocation4 [shape = 's32[1]{0}', space=sflag, size = 0x4, scoped, tag = 'scoped memory for tpu_custom_call.1']
    %12 = vsyncpa [#allocation4], 0
    // Predicated region
    $region2: #{tpu_custom_call.1} parent=1 // pred_check
      _
    $region3: #{tpu_custom_call.1} parent=1 // pred_check_branch
      %14 = sbr.rel (0) target = $region5
    $region4: #{tpu_custom_call.1} parent=1 // pred_region
      _
    $region5: #{tpu_custom_call.1} parent=1 // pred_fallthru
      _
    // Predicated region
    $region6: #{tpu_custom_call.1} parent=1 // pred_check
      _
    $region7: #{tpu_custom_call.1} parent=1 // pred_check_branch
      %16 = sbr.rel (0) target = $region9
    $region8: #{tpu_custom_call.1} parent=1 // pred_region
      _
    $region9: #{tpu_custom_call.1} parent=1 // pred_fallthru
      _
    // Predicated region
    $region10: #{tpu_custom_call.1} parent=1 // pred_check
      _
    $region11: #{tpu_custom_call.1} parent=1 // pred_check_branch
      %18 = sbr.rel (0) target = $region13
    $region12: #{tpu_custom_call.1} parent=1 // pred_region
      _
    $region13: #{tpu_custom_call.1} parent=1 // pred_fallthru
      _
    // Predicated region
    $region14: #{tpu_custom_call.1} parent=1 // pred_check
      _
    $region15: #{tpu_custom_call.1} parent=1 // pred_check_branch
      %20 = sbr.rel (0) target = $region17
    $region16: #{tpu_custom_call.1} parent=1 // pred_region
      _
    $region17: #{tpu_custom_call.1} parent=1 // pred_fallthru
      _
    // Predicated region
    $region18: #{tpu_custom_call.1} parent=1 // pred_check
      _
    $region19: #{tpu_custom_call.1} parent=1 // pred_check_branch
      %22 = sbr.rel (0) target = $region21
    $region20: #{tpu_custom_call.1} parent=1 // pred_region
      _
    $region21: #{tpu_custom_call.1} parent=1 // pred_fallthru
      _
    // Predicated region
    $region22: #{tpu_custom_call.1} parent=1 // pred_check
      _
    $region23: #{tpu_custom_call.1} parent=1 // pred_check_branch
      %24 = sbr.rel (0) target = $region25
    $region24: #{tpu_custom_call.1} parent=1 // pred_region
      _
    $region25: #{tpu_custom_call.1} parent=1 // pred_fallthru
      _
    // Predicated region
    $region26: #{tpu_custom_call.1} parent=1 // pred_check
      _
    $region27: #{tpu_custom_call.1} parent=1 // pred_check_branch
      %26 = sbr.rel (0) target = $region29
    $region28: #{tpu_custom_call.1} parent=1 // pred_region
      _
    $region29: #{tpu_custom_call.1} parent=1 // pred_fallthru
      _
    %p28 = scmp.eq.s32.totalorder 0, 0
    // Predicated region
    $region30: #{tpu_custom_call.1} parent=1 // pred_check
      %p29 = pneg %p28
    $region31: #{tpu_custom_call.1} parent=1 // pred_check_branch
      %31 = sbr.rel (%p29) target = $region33
    $region32: #{tpu_custom_call.1} parent=1 // pred_region
      %v32 = vld [vmem:[%s0] sm:$0xf]
      %v33 = vld [vmem:[%s0 + $0x4] sm:$0xf]
      %v34 = vld [vmem:[%s0 + $0x8] sm:$0x1]
      %v35 = vld [vmem:[%s1] sm:$0xf]
      %v36 = vld [vmem:[%s1 + $0x4] sm:$0xf]
      %v37 = vld [vmem:[%s1 + $0x8] sm:$0xf]
      %v38 = vld [vmem:[%s1 + $0xc] sm:$0xf]
      %v39 = vld [vmem:[%s2] sm:$0x1]
      %v41 = vperm.slane %v39, 0
      %v46 = vunpack.c.l.b16 %v32
      %v47 = vunpack.c.l.b16 %v33
      %v48 = vunpack.c.l.b16 %v34
      %v49 = vpack.c.b16 %v47, %v46
      %v50 = vpack.c.b16 %v48, %v48
      %v55 = vunpack.c.l.b16 %v35
      %v56 = vunpack.c.l.b16 %v36
      %v57 = vunpack.c.l.b16 %v37
      %v58 = vunpack.c.l.b16 %v38
      %v59 = vpack.c.b16 %v56, %v55
      %v60 = vpack.c.b16 %v58, %v57
      %vm61 = vcmask 261120
      %v63 = vsel %vm61, %v49, 0
      %v66 = vsel %vm61, %v50, 0
      %v69 = vsel %vm61, %v59, 0
      %v72 = vsel %vm61, %v60, 0
      %74 = vmatpush.bf16.xpose.msra.mxu0 0
      %75 = vmatpush.bf16.xpose.msra.mxu0 0
      %76 = vmatpush.bf16.xpose.msra.mxu0 0
      %77 = vmatpush.bf16.xpose.msra.mxu0 0
      %78 = vmatpush.bf16.xpose.msra.mxu0 0
      %79 = vmatpush.bf16.xpose.msra.mxu0 0
      %80 = vmatpush.bf16.xpose.msra.mxu0 %v72
      %81 = vmatpush.bf16.xpose.msra.mxu0 %v69
      %82 = vmatmul.bf16.gmra.mxu0 %v63
      %v83 = vpop.f32.mrf.mxu0
      %v84 = vadd.f32 %v41, %v83
      %v85 = vpop.f32.mrf.mxu0
      %v86 = vadd.f32 %v41, %v85
      %87 = vmatmul.bf16.gmra.mxu0 %v66
      %v88 = vpop.f32.mrf.mxu0
      %v89 = vadd.f32 %v41, %v88
      %v90 = vpop.f32.mrf.mxu0
      %91 = vdwg.mxu0
      %v92 = vmul.f32 %v84, 0.5
      %v93 = vmul.f32 %v86, 0.5
      %v94 = vmul.f32 %v89, 0.5
      %v95 = vmul.f32 %v84, 0.70710677
      %v96 = vmul.f32 %v86, 0.70710677
      %v97 = vmul.f32 %v89, 0.70710677
      %v98 = vmul.f32 %v95, %v95
      %v99 = vmin.f32 16.0, %v98
      %v100 = vmul.f32 %v99, 2.1237322e-06
      %v101 = vadd.f32 %v100, 0.00028619796
      %v102 = vmul.f32 %v99, %v101
      %v103 = vadd.f32 %v102, 0.0036580483
      %v104 = vmul.f32 %v99, %v103
      %v105 = vadd.f32 %v104, 0.05243302
      %v106 = vmul.f32 %v99, %v105
      %v107 = vadd.f32 %v106, 0.18741608
      %v108 = vmul.f32 %v99, %v107
      %v109 = vadd.f32 %v108, 1.1283791
      %v110 = vmul.f32 %v95, %v109
      %v111 = vmul.f32 %v99, 3.8918573e-05
      %v112 = vadd.f32 %v111, 0.001143296
      %v113 = vmul.f32 %v99, %v112
      %v114 = vadd.f32 %v113, 0.014752088
      %v115 = vmul.f32 %v99, %v114
      %v116 = vadd.f32 %v115, 0.112945676
      %v117 = vmul.f32 %v99, %v116
      %v118 = vadd.f32 %v117, 0.4994258
      %v119 = vmul.f32 %v99, %v118
      %v120 = vadd.f32 %v119, 1.0
      %v121 = vrcp.pop %v120
      %v122 = vmul.f32 %v120, %v121
      %v123 = vsub.f32 1.0, %v122
      %v124 = vmul.f32 %v121, %v123
      %v125 = vadd.f32 %v121, %v124
      %vm126 = vweird.f32 %v120
      %vm127 = vweird.f32 %v121
      %vm128 = vmor %vm126, %vm127
      %v129 = vsel %vm128, %v121, %v125
      %v130 = vand.u32 2147483647, %v120
      %vm131 = vcmp.eq.f32.partialorder %v130, 8.507059e+37
      %v132 = vand.u32 %v120, 2147483648
      %v133 = vor.u32 1.1754944e-38, %v132
      %v134 = vsel %vm131, %v133, %v129
      %v135 = vmul.f32 %v110, %v134
      %v136 = vmin.f32 %v135, 1.0
      %v137 = vmax.f32 %v136, -1.0
      %v138 = vmul.f32 %v96, %v96
      %v139 = vmin.f32 16.0, %v138
      %v140 = vmul.f32 %v139, 2.1237322e-06
      %v141 = vadd.f32 %v140, 0.00028619796
      %v142 = vmul.f32 %v139, %v141
      %v143 = vadd.f32 %v142, 0.0036580483
      %v144 = vmul.f32 %v139, %v143
      %v145 = vadd.f32 %v144, 0.05243302
      %v146 = vmul.f32 %v139, %v145
      %v147 = vadd.f32 %v146, 0.18741608
      %v148 = vmul.f32 %v139, %v147
      %v149 = vadd.f32 %v148, 1.1283791
      %v150 = vmul.f32 %v96, %v149
      %v151 = vmul.f32 %v139, 3.8918573e-05
      %v152 = vadd.f32 %v151, 0.001143296
      %v153 = vmul.f32 %v139, %v152
      %v154 = vadd.f32 %v153, 0.014752088
      %v155 = vmul.f32 %v139, %v154
      %v156 = vadd.f32 %v155, 0.112945676
      %v157 = vmul.f32 %v139, %v156
      %v158 = vadd.f32 %v157, 0.4994258
      %v159 = vmul.f32 %v139, %v158
      %v160 = vadd.f32 %v159, 1.0
      %v161 = vrcp.pop %v160
      %v162 = vmul.f32 %v160, %v161
      %v163 = vsub.f32 1.0, %v162
      %v164 = vmul.f32 %v161, %v163
      %v165 = vadd.f32 %v161, %v164
      %vm166 = vweird.f32 %v160
      %vm167 = vweird.f32 %v161
      %vm168 = vmor %vm166, %vm167
      %v169 = vsel %vm168, %v161, %v165
      %v170 = vand.u32 2147483647, %v160
      %vm171 = vcmp.eq.f32.partialorder %v170, 8.507059e+37
      %v172 = vand.u32 %v160, 2147483648
      %v173 = vor.u32 1.1754944e-38, %v172
      %v174 = vsel %vm171, %v173, %v169
      %v175 = vmul.f32 %v150, %v174
      %v176 = vmin.f32 %v175, 1.0
      %v177 = vmax.f32 %v176, -1.0
      %v178 = vmul.f32 %v97, %v97
      %v179 = vmin.f32 16.0, %v178
      %v180 = vmul.f32 %v179, 2.1237322e-06
      %v181 = vadd.f32 %v180, 0.00028619796
      %v182 = vmul.f32 %v179, %v181
      %v183 = vadd.f32 %v182, 0.0036580483
      %v184 = vmul.f32 %v179, %v183
      %v185 = vadd.f32 %v184, 0.05243302
      %v186 = vmul.f32 %v179, %v185
      %v187 = vadd.f32 %v186, 0.18741608
      %v188 = vmul.f32 %v179, %v187
      %v189 = vadd.f32 %v188, 1.1283791
      %v190 = vmul.f32 %v97, %v189
      %v191 = vmul.f32 %v179, 3.8918573e-05
      %v192 = vadd.f32 %v191, 0.001143296
      %v193 = vmul.f32 %v179, %v192
      %v194 = vadd.f32 %v193, 0.014752088
      %v195 = vmul.f32 %v179, %v194
      %v196 = vadd.f32 %v195, 0.112945676
      %v197 = vmul.f32 %v179, %v196
      %v198 = vadd.f32 %v197, 0.4994258
      %v199 = vmul.f32 %v179, %v198
      %v200 = vadd.f32 %v199, 1.0
      %v201 = vrcp.pop %v200
      %v202 = vmul.f32 %v200, %v201
      %v203 = vsub.f32 1.0, %v202
      %v204 = vmul.f32 %v201, %v203
      %v205 = vadd.f32 %v201, %v204
      %vm206 = vweird.f32 %v200
      %vm207 = vweird.f32 %v201
      %vm208 = vmor %vm206, %vm207
      %v209 = vsel %vm208, %v201, %v205
      %v210 = vand.u32 2147483647, %v200
      %vm211 = vcmp.eq.f32.partialorder %v210, 8.507059e+37
      %v212 = vand.u32 %v200, 2147483648
      %v213 = vor.u32 1.1754944e-38, %v212
      %v214 = vsel %vm211, %v213, %v209
      %v215 = vmul.f32 %v190, %v214
      %v216 = vmin.f32 %v215, 1.0
      %v217 = vmax.f32 %v216, -1.0
      %v218 = vadd.f32 %v137, 1.0
      %v219 = vadd.f32 %v177, 1.0
      %v220 = vadd.f32 %v217, 1.0
      %v221 = vmul.f32 %v92, %v218
      %v222 = vmul.f32 %v93, %v219
      %v223 = vmul.f32 %v94, %v220
      %v224 = vsel %vm61, %v221, 0.0
      %225 = vadd.xlane.f32.xlu0 %v224
      %v226 = vpop.xlane.xlu0 %225
      %v227 = vsel %vm61, %v222, 0.0
      %228 = vadd.xlane.f32.xlu0 %v227
      %v229 = vpop.xlane.xlu0 %228
      %vm230 = vcmask 254976
      %v231 = vsel %vm230, %v223, 0.0
      %232 = vadd.xlane.f32.xlu0 %v231
      %v233 = vpop.xlane.xlu0 %232
      %v234 = vrcp.pop 32.0
      %v235 = vmul.f32 32.0, %v234
      %v236 = vsub.f32 1.0, %v235
      %v237 = vmul.f32 %v234, %v236
      %v238 = vadd.f32 %v234, %v237
      %vm239 = vweird.f32 %v234
      %v240 = vsel %vm239, %v234, %v238
      %v241 = vmul.f32 %v226, %v240
      %v242 = vmul.f32 %v229, %v240
      %v243 = vmul.f32 %v233, %v240
      %v244 = vsub.f32 %v221, %v241
      %v245 = vsub.f32 %v222, %v242
      %v246 = vsub.f32 %v223, %v243
      %v247 = vmul.f32 %v244, %v244
      %v248 = vmul.f32 %v245, %v245
      %v249 = vmul.f32 %v246, %v246
      %v250 = vsel %vm61, %v247, 0.0
      %251 = vadd.xlane.f32.xlu0 %v250
      %v252 = vpop.xlane.xlu0 %251
      %v253 = vsel %vm61, %v248, 0.0
      %254 = vadd.xlane.f32.xlu0 %v253
      %v255 = vpop.xlane.xlu0 %254
      %v256 = vsel %vm230, %v249, 0.0
      %257 = vadd.xlane.f32.xlu0 %v256
      %v258 = vpop.xlane.xlu0 %257
      %v259 = vmul.f32 %v252, %v240
      %v260 = vmul.f32 %v255, %v240
      %v261 = vmul.f32 %v258, %v240
      %v262 = vadd.f32 %v259, 1e-12
      %v263 = vadd.f32 %v260, 1e-12
      %v264 = vadd.f32 %v261, 1e-12
      %v265 = vrsqrt.pop %v262
      %v266 = vmul.f32 %v265, %v262
      %v267 = vmul.f32 %v266, %v265
      %v268 = vmul.f32 0.5, %v267
      %v269 = vsub.f32 1.5, %v268
      %v270 = vmul.f32 %v265, %v269
      %vm271 = vweird.f32 %v262
      %vm272 = vweird.f32 %v265
      %vm273 = vmor %vm271, %vm272
      %v274 = vsel %vm273, %v265, %v270
      %v275 = vrsqrt.pop %v263
      %v276 = vmul.f32 %v275, %v263
      %v277 = vmul.f32 %v276, %v275
      %v278 = vmul.f32 0.5, %v277
      %v279 = vsub.f32 1.5, %v278
      %v280 = vmul.f32 %v275, %v279
      %vm281 = vweird.f32 %v263
      %vm282 = vweird.f32 %v275
      %vm283 = vmor %vm281, %vm282
      %v284 = vsel %vm283, %v275, %v280
      %v285 = vrsqrt.pop %v264
      %v286 = vmul.f32 %v285, %v264
      %v287 = vmul.f32 %v286, %v285
      %v288 = vmul.f32 0.5, %v287
      %v289 = vsub.f32 1.5, %v288
      %v290 = vmul.f32 %v285, %v289
      %vm291 = vweird.f32 %v264
      %vm292 = vweird.f32 %v285
      %vm293 = vmor %vm291, %vm292
      %v294 = vsel %vm293, %v285, %v290
      %v295 = vmul.f32 %v244, %v274
      %v296 = vmul.f32 %v245, %v284
      %v297 = vmul.f32 %v246, %v294
      %v298 = vld [vmem:[%s3] sm:$0x1]
      %v300 = vperm.slane %v298, 0
      %v302 = vmul.f32 %v300, %v295
      %v303 = vmul.f32 %v300, %v296
      %v304 = vmul.f32 %v300, %v297
      %v305 = vld [vmem:[%s4] sm:$0x1]
      %v307 = vperm.slane %v305, 0
      %v309 = vadd.f32 %v302, %v307
      %v310 = vadd.f32 %v303, %v307
      %v311 = vadd.f32 %v304, %v307
      %v312 = vpack.c.bf16 %v309, %v309
      %v313 = vpack.c.bf16 %v310, %v310
      %v314 = vpack.c.bf16 %v311, %v311
      %vm315 = vcmask 257024
      %316 = vst.msk [vmem:[#allocation2] sm:$0xf] %vm315, %v312
      %317 = vst.msk [vmem:[#allocation2 + $0x4] sm:$0xf] %vm315, %v313
      %vm318 = vcmask 253952
      %319 = vst.msk [vmem:[#allocation2 + $0x8] sm:$0x1] %vm318, %v314
    $region33: #{tpu_custom_call.1} parent=1 // pred_fallthru
      _
    %v320 = vld [vmem:[#allocation2] sm:$0xf]
    %v321 = vld [vmem:[#allocation2 + $0x4] sm:$0xf]
    %v322 = vld [vmem:[#allocation2 + $0x8] sm:$0x1]
    %v323 = vld [vmem:[%s5] sm:$0xf]
    %v324 = vld [vmem:[%s5 + $0x4] sm:$0xf]
    %v325 = vld [vmem:[%s5 + $0x8] sm:$0xf]
    %v326 = vld [vmem:[%s5 + $0xc] sm:$0xf]
    %v327 = vld [vmem:[%s5 + $0x10] sm:$0xf]
    %v328 = vld [vmem:[%s5 + $0x14] sm:$0xf]
    %v329 = vld [vmem:[%s5 + $0x18] sm:$0xf]
    %v330 = vld [vmem:[%s5 + $0x1c] sm:$0xf]
    %v331 = vld [vmem:[%s5 + $0x20] sm:$0xf]
    %v332 = vld [vmem:[%s5 + $0x24] sm:$0xf]
    %v333 = vld [vmem:[%s5 + $0x28] sm:$0xf]
    %v334 = vld [vmem:[%s5 + $0x2c] sm:$0xf]
    %v335 = vld [vmem:[%s5 + $0x30] sm:$0xf]
    %v336 = vld [vmem:[%s5 + $0x34] sm:$0xf]
    %v337 = vld [vmem:[%s5 + $0x38] sm:$0xf]
    %v338 = vld [vmem:[%s5 + $0x3c] sm:$0xf]
    %v339 = vld [vmem:[%s5 + $0x40] sm:$0xf]
    %v340 = vld [vmem:[%s5 + $0x44] sm:$0xf]
    %v341 = vld [vmem:[%s5 + $0x48] sm:$0xf]
    %v342 = vld [vmem:[%s5 + $0x4c] sm:$0xf]
    %v343 = vld [vmem:[%s5 + $0x50] sm:$0xf]
    %v344 = vld [vmem:[%s5 + $0x54] sm:$0xf]
    %v345 = vld [vmem:[%s5 + $0x58] sm:$0xf]
    %v346 = vld [vmem:[%s5 + $0x5c] sm:$0xf]
    %v347 = vld [vmem:[%s5 + $0x60] sm:$0xf]
    %v348 = vld [vmem:[%s5 + $0x64] sm:$0xf]
    %v349 = vld [vmem:[%s5 + $0x68] sm:$0xf]
    %v350 = vld [vmem:[%s5 + $0x6c] sm:$0xf]
    %v351 = vld [vmem:[%s5 + $0x70] sm:$0xf]
    %v352 = vld [vmem:[%s5 + $0x74] sm:$0xf]
    %v353 = vld [vmem:[%s5 + $0x78] sm:$0xf]
    %v354 = vld [vmem:[%s5 + $0x7c] sm:$0xf]
    %v355 = vld [vmem:[%s5 + $0x80] sm:$0xf]
    %v356 = vld [vmem:[%s5 + $0x84] sm:$0xf]
    %v357 = vld [vmem:[%s5 + $0x88] sm:$0xf]
    %v358 = vld [vmem:[%s5 + $0x8c] sm:$0xf]
    %v359 = vld [vmem:[%s5 + $0x90] sm:$0xf]
    %v360 = vld [vmem:[%s5 + $0x94] sm:$0x3]
    %v361 = vld [vmem:[%s6] sm:$0x7]
    %v363 = vperm.slane %v361, 0
    %v364 = vperm.slane %v361, 1
    %v365 = vperm.slane %v361, 2
    %v372 = vunpack.c.l.b16 %v320
    %v373 = vunpack.c.l.b16 %v321
    %v374 = vunpack.c.l.b16 %v322
    %v375 = vpack.c.b16 %v373, %v372
    %v376 = vpack.c.b16 %v374, %v374
    %v415 = vunpack.c.l.b16 %v323
    %v416 = vunpack.c.l.b16 %v324
    %v417 = vunpack.c.l.b16 %v325
    %v418 = vunpack.c.l.b16 %v326
    %v419 = vunpack.c.l.b16 %v327
    %v420 = vunpack.c.l.b16 %v328
    %v421 = vunpack.c.l.b16 %v329
    %v422 = vunpack.c.l.b16 %v330
    %v423 = vunpack.c.l.b16 %v331
    %v424 = vunpack.c.l.b16 %v332
    %v425 = vunpack.c.l.b16 %v333
    %v426 = vunpack.c.l.b16 %v334
    %v427 = vunpack.c.l.b16 %v335
    %v428 = vunpack.c.l.b16 %v336
    %v429 = vunpack.c.l.b16 %v337
    %v430 = vunpack.c.l.b16 %v338
    %v431 = vunpack.c.l.b16 %v339
    %v432 = vunpack.c.l.b16 %v340
    %v433 = vunpack.c.l.b16 %v341
    %v434 = vunpack.c.l.b16 %v342
    %v435 = vunpack.c.l.b16 %v343
    %v436 = vunpack.c.l.b16 %v344
    %v437 = vunpack.c.l.b16 %v345
    %v438 = vunpack.c.l.b16 %v346
    %v439 = vunpack.c.l.b16 %v347
    %v440 = vunpack.c.l.b16 %v348
    %v441 = vunpack.c.l.b16 %v349
    %v442 = vunpack.c.l.b16 %v350
    %v443 = vunpack.c.l.b16 %v351
    %v444 = vunpack.c.l.b16 %v352
    %v445 = vunpack.c.l.b16 %v353
    %v446 = vunpack.c.l.b16 %v354
    %v447 = vunpack.c.l.b16 %v355
    %v448 = vunpack.c.l.b16 %v356
    %v449 = vunpack.c.l.b16 %v357
    %v450 = vunpack.c.l.b16 %v358
    %v451 = vunpack.c.l.b16 %v359
    %v452 = vunpack.c.l.b16 %v360
    %v453 = vpack.c.b16 %v416, %v415
    %v454 = vpack.c.b16 %v418, %v417
    %v455 = vpack.c.b16 %v420, %v419
    %v456 = vpack.c.b16 %v422, %v421
    %v457 = vpack.c.b16 %v424, %v423
    %v458 = vpack.c.b16 %v426, %v425
    %v459 = vpack.c.b16 %v428, %v427
    %v460 = vpack.c.b16 %v430, %v429
    %v461 = vpack.c.b16 %v432, %v431
    %v462 = vpack.c.b16 %v434, %v433
    %v463 = vpack.c.b16 %v436, %v435
    %v464 = vpack.c.b16 %v438, %v437
    %v465 = vpack.c.b16 %v440, %v439
    %v466 = vpack.c.b16 %v442, %v441
    %v467 = vpack.c.b16 %v444, %v443
    %v468 = vpack.c.b16 %v446, %v445
    %v469 = vpack.c.b16 %v448, %v447
    %v470 = vpack.c.b16 %v450, %v449
    %v471 = vpack.c.b16 %v452, %v451
    %vm472 = vcmask 261120
    %v474 = vsel %vm472, %v375, 0
    %v477 = vsel %vm472, %v376, 0
    %v480 = vsel %vm472, %v453, 0
    %v483 = vsel %vm472, %v454, 0
    %v486 = vsel %vm472, %v455, 0
    %v489 = vsel %vm472, %v456, 0
    %v492 = vsel %vm472, %v457, 0
    %v495 = vsel %vm472, %v458, 0
    %v498 = vsel %vm472, %v459, 0
    %v501 = vsel %vm472, %v460, 0
    %v504 = vsel %vm472, %v461, 0
    %v507 = vsel %vm472, %v462, 0
    %v510 = vsel %vm472, %v463, 0
    %v513 = vsel %vm472, %v464, 0
    %v516 = vsel %vm472, %v465, 0
    %v519 = vsel %vm472, %v466, 0
    %v522 = vsel %vm472, %v467, 0
    %v525 = vsel %vm472, %v468, 0
    %v528 = vsel %vm472, %v469, 0
    %v531 = vsel %vm472, %v470, 0
    %v534 = vsel %vm472, %v471, 0
    %536 = vmatpush.bf16.xpose.msra.mxu0 %v501
    %537 = vmatpush.bf16.xpose.msra.mxu0 %v498
    %538 = vmatpush.bf16.xpose.msra.mxu0 %v495
    %539 = vmatpush.bf16.xpose.msra.mxu0 %v492
    %540 = vmatpush.bf16.xpose.msra.mxu0 %v489
    %541 = vmatpush.bf16.xpose.msra.mxu0 %v486
    %542 = vmatpush.bf16.xpose.msra.mxu0 %v483
    %543 = vmatpush.bf16.xpose.msra.mxu0 %v480
    %544 = vmatmul.bf16.gmra.mxu0 %v474
    %v545 = vpop.f32.mrf.mxu0
    %v546 = vadd.f32 %v363, %v545
    %v547 = vpop.f32.mrf.mxu0
    %v548 = vadd.f32 %v363, %v547
    %549 = vmatmul.bf16.gmra.mxu0 %v477
    %v550 = vpop.f32.mrf.mxu0
    %v551 = vadd.f32 %v363, %v550
    %v552 = vpop.f32.mrf.mxu0
    %553 = vdwg.mxu0
    %554 = vmatpush.bf16.xpose.msra.mxu0 %v525
    %555 = vmatpush.bf16.xpose.msra.mxu0 %v522
    %556 = vmatpush.bf16.xpose.msra.mxu0 %v519
    %557 = vmatpush.bf16.xpose.msra.mxu0 %v516
    %558 = vmatpush.bf16.xpose.msra.mxu0 %v513
    %559 = vmatpush.bf16.xpose.msra.mxu0 %v510
    %560 = vmatpush.bf16.xpose.msra.mxu0 %v507
    %561 = vmatpush.bf16.xpose.msra.mxu0 %v504
    %562 = vmatmul.bf16.gmra.mxu0 %v474
    %v563 = vpop.f32.mrf.mxu0
    %v564 = vadd.f32 %v364, %v563
    %v565 = vpop.f32.mrf.mxu0
    %v566 = vadd.f32 %v364, %v565
    %567 = vmatmul.bf16.gmra.mxu0 %v477
    %v568 = vpop.f32.mrf.mxu0
    %v569 = vadd.f32 %v364, %v568
    %v570 = vpop.f32.mrf.mxu0
    %571 = vdwg.mxu0
    %572 = vmatpush.bf16.xpose.msra.mxu0 0
    %573 = vmatpush.bf16.xpose.msra.mxu0 0
    %574 = vmatpush.bf16.xpose.msra.mxu0 0
    %575 = vmatpush.bf16.xpose.msra.mxu0 0
    %576 = vmatpush.bf16.xpose.msra.mxu0 0
    %577 = vmatpush.bf16.xpose.msra.mxu0 %v534
    %578 = vmatpush.bf16.xpose.msra.mxu0 %v531
    %579 = vmatpush.bf16.xpose.msra.mxu0 %v528
    %580 = vmatmul.bf16.gmra.mxu0 %v474
    %v581 = vpop.f32.mrf.mxu0
    %v582 = vadd.f32 %v365, %v581
    %v583 = vpop.f32.mrf.mxu0
    %v584 = vadd.f32 %v365, %v583
    %585 = vmatmul.bf16.gmra.mxu0 %v477
    %v586 = vpop.f32.mrf.mxu0
    %v587 = vadd.f32 %v365, %v586
    %v588 = vpop.f32.mrf.mxu0
    %589 = vdwg.mxu0
    %590 = vst [vmem:[#allocation3] sm:$0xff] %v546
    %591 = vst [vmem:[#allocation3 + $0x8] sm:$0xff] %v564
    %vm592 = vcmask 359424
    %593 = vst.msk [vmem:[#allocation3 + $0x10] sm:$0xff] %vm592, %v582
    %594 = vst [vmem:[#allocation3 + $0x18] sm:$0xff] %v548
    %595 = vst [vmem:[#allocation3 + $0x20] sm:$0xff] %v566
    %596 = vst.msk [vmem:[#allocation3 + $0x28] sm:$0xff] %vm592, %v584
    %597 = vst [vmem:[#allocation3 + $0x30] sm:$0x3] %v551
    %598 = vst [vmem:[#allocation3 + $0x38] sm:$0x3] %v569
    %vm599 = vcmask 353280
    %600 = vst.msk [vmem:[#allocation3 + $0x40] sm:$0x3] %vm599, %v587
    // Predicated region
    $region34: #{tpu_custom_call.1} parent=1 // pred_check
      _
    $region35: #{tpu_custom_call.1} parent=1 // pred_check_branch
      %602 = sbr.rel (0) target = $region37
    $region36: #{tpu_custom_call.1} parent=1 // pred_region
      %604 = vsyncadd [#allocation4], 0
      %s605 = sshll.u32 [#allocation3], 4
      %s606 = int_to_ptr.vmem [resolvable:$true] %s605
      %s607 = sshll.u32 %s7, 4
      %s608 = int_to_ptr.hbm [resolvable:$true] %s607
      %613 = dma.vmem_to_hbm [thread:$0]  %s606, 1152, %s608, [#allocation4], 384, 384, 24
    $region37: #{tpu_custom_call.1} parent=1 // pred_fallthru
      _
    // Predicated region
    $region38: #{tpu_custom_call.1} parent=1 // pred_check
      _
    $region39: #{tpu_custom_call.1} parent=1 // pred_check_branch
      %615 = sbr.rel (0) target = $region41
    $region40: #{tpu_custom_call.1} parent=1 // pred_region
      %617 = dma.done [#allocation4], 1152
    $region41: #{tpu_custom_call.1} parent=1 // pred_fallthru
      _
    %618 = vsyncpa [#allocation4], 1

</llo_original>
